<compile_context>
chip_gen: v7x
topology: tpu7x:2x2x1
jax: 0.10.0
libtpu: 0.0.40
codegen_flags: <defaults>
</compile_context>

<pallas_src>
import functools

import jax
import jax.numpy as jnp
from jax import lax
from jax.experimental import pallas as pl
from jax.experimental.pallas import tpu as pltpu


def _weighted_state_loss_kernel(pred_ref, targ_ref, w_ref, out_ref, acc_ref, *,
                                tile_rows, acc_rows, n_rows, steps_per_slice,
                                needs_mask, inv_count):
    """Streams (pred - targ)**2 * weights into a small f32 accumulator."""
    c = pl.program_id(0)          # core-slice axis ("parallel")
    s = pl.program_id(1)          # sequential reduce axis ("arbitrary")

    @pl.when(s == 0)
    def _():
        acc_ref[...] = jnp.zeros_like(acc_ref)

    pred = pred_ref[...].astype(jnp.float32)      # (tile_rows, HT)
    targ = targ_ref[...].astype(jnp.float32)      # (tile_rows, HT)
    w = w_ref[...].astype(jnp.float32)            # (1, HT), broadcasts over rows

    diff = pred - targ
    weighted = diff * diff * w                    # elementwise L2 * weights (VPU)

    def _fold(x):
        # Fold tile rows into acc_rows sublanes: pure vreg-wise VPU adds
        # (the reshape splits the sublane axis on an (8,128)-tile boundary,
        # so it is layout-free).
        if tile_rows == acc_rows:
            return x
        return jnp.sum(x.reshape(tile_rows // acc_rows, acc_rows, -1), axis=0)

    if not needs_mask:
        # Steady state: no masking anywhere in the hot loop.
        acc_ref[...] += _fold(weighted)
    else:
        blk = c * steps_per_slice + s             # logical row-block index
        row_start = blk * tile_rows
        is_full = row_start + tile_rows <= n_rows

        @pl.when(is_full)
        def _():
            acc_ref[...] += _fold(weighted)

        @pl.when(jnp.logical_not(is_full))
        def _():
            # Partial / fully-OOB block: select (not multiply) so any padded
            # rows (clamped index_map re-reads the last block) never leak in.
            row_ids = row_start + lax.broadcasted_iota(
                jnp.int32, weighted.shape, 0)
            masked = jnp.where(row_ids < n_rows, weighted, 0.0)
            acc_ref[...] += _fold(masked)

    @pl.when(s == pl.num_programs(1) - 1)
    def _():
        # One-time cross-sublane / cross-lane reduce + mean normalization.
        partial = jnp.sum(acc_ref[...], axis=0, keepdims=True)      # (1, HT)
        out_ref[...] = jnp.sum(partial, axis=1, keepdims=True) * inv_count


def weighted_state_loss(pred, targ, weights, *,
                        target_block_bytes=8 * 1024 * 1024):
    """Pallas implementation of WeightedStateLoss.forward (L2 variant).

    pred, targ: [B, H, T]; weights: [H, T] (broadcast over batch).
    Returns (weighted_loss, {'a0_loss': weighted_loss}) like the PyTorch module.
    """
    B, H, T = pred.shape
    assert targ.shape == (B, H, T)
    assert weights.shape == (H, T)
    assert pred.dtype == targ.dtype, "pred/targ dtypes must match"

    HT = H * T
    # Lane-dense 2D views (metadata reshapes; no HBM data movement).
    pred2d = pred.reshape(B, HT)
    targ2d = targ.reshape(B, HT)
    w2d = weights.reshape(1, HT)

    itemsize = jnp.dtype(pred.dtype).itemsize
    row_align = {1: 32, 2: 16, 4: 8}.get(itemsize, 8)

    # Generation-aware VMEM budget (v5e/v6e: 128 MiB, v7x: 64 MiB per TC).
    try:
        vmem_cap = int(pltpu.get_tpu_info().vmem_capacity_bytes)
    except Exception:
        vmem_cap = 64 * 1024 * 1024   # conservative: assume v7x
    usable = int(0.75 * vmem_cap)

    # 2 inputs x 2 pipeline buffers = 4 input-sized blocks must fit with slack.
    per_input_budget = min(int(target_block_bytes), usable // 6)
    max_rows = max(row_align,
                   (per_input_budget // (HT * itemsize)) // row_align * row_align)

    if B <= max_rows:
        tile_rows = B            # single full-extent block; always legal
    else:
        tile_rows = max_rows     # multiple of row_align (>= 8)

    num_blocks = pl.cdiv(B, tile_rows)
    # Two slices so v7x's 2 TensorCores can each take half the row blocks;
    # on single-TC chips the extra "parallel" axis simply runs sequentially.
    num_slices = 2 if num_blocks >= 2 else 1
    steps_per_slice = pl.cdiv(num_blocks, num_slices)
    grid = (num_slices, steps_per_slice)
    needs_mask = (num_slices * steps_per_slice * tile_rows) != B

    acc_rows = 8 if tile_rows % 8 == 0 else tile_rows
    inv_count = 1.0 / float(B * H * T)   # .mean() over all [B, H, T] elements

    kernel = functools.partial(
        _weighted_state_loss_kernel,
        tile_rows=tile_rows, acc_rows=acc_rows, n_rows=B,
        steps_per_slice=steps_per_slice, needs_mask=needs_mask,
        inv_count=inv_count)

    if needs_mask:
        def in_map(c, s, _spc=steps_per_slice, _last=num_blocks - 1):
            # Clamp: fully-out-of-range blocks re-read the last valid block;
            # the kernel masks their contribution to zero.
            return (jnp.minimum(c * _spc + s, _last), 0)
    else:
        def in_map(c, s, _spc=steps_per_slice):
            return (c * _spc + s, 0)

    # Explicit VMEM budget: 2 inputs x 2 pipeline buffers x block + small
    # accumulator + weights + slack, capped below the physical capacity.
    block_bytes = tile_rows * HT * itemsize
    acc_bytes = acc_rows * HT * 4
    est = 2 * 2 * block_bytes + acc_bytes + 4 * HT * 4 + (1 << 15)
    vmem_limit = int(min(max(int(est * 1.25), 16 * 1024 * 1024), usable))
    vmem_limit = max(vmem_limit, min(int(est) + (1 << 20), vmem_cap))

    out = pl.pallas_call(
        kernel,
        out_shape=jax.ShapeDtypeStruct((num_slices, 1), jnp.float32),
        grid_spec=pltpu.PrefetchScalarGridSpec(
            num_scalar_prefetch=0,
            grid=grid,
            in_specs=[
                pl.BlockSpec((tile_rows, HT), in_map),      # pred
                pl.BlockSpec((tile_rows, HT), in_map),      # targ
                pl.BlockSpec((1, HT), lambda c, s: (0, 0)),  # weights
            ],
            out_specs=pl.BlockSpec((1, 1), lambda c, s: (c, 0)),
            scratch_shapes=[pltpu.VMEM((acc_rows, HT), jnp.float32)],
        ),
        compiler_params=pltpu.CompilerParams(
            # Leading axis: independent per-slice partials -> "parallel"
            # (shardable across v7x's 2 TCs). Inner axis: sequential reduce
            # into the accumulator -> must stay "arbitrary".
            dimension_semantics=("parallel", "arbitrary"),
            vmem_limit_bytes=vmem_limit,
        ),
    )(pred2d, targ2d, w2d)

    weighted_loss = jnp.sum(out)   # sum the per-slice partials
    return weighted_loss, {"a0_loss": weighted_loss}


if __name__ == "__main__":
    key = jax.random.PRNGKey(0)

    # --- Small shapes consistent with [batch_size x horizon x transition_dim].
    B, H, T = 2, 8, 32
    k_pred, k_targ, k_w, k2 = jax.random.split(key, 4)
    pred = jax.random.normal(k_pred, (B, H, T), dtype=jnp.float32)
    targ = jax.random.normal(k_targ, (B, H, T), dtype=jnp.float32)
    weights = jax.random.uniform(k_w, (H, T), dtype=jnp.float32,
                                 minval=0.5, maxval=1.5)

    loss, info = weighted_state_loss(pred, targ, weights)
    jax.block_until_ready(loss)
    ref = jnp.mean(((pred - targ) ** 2) * weights[None])
    assert jnp.allclose(loss, ref, rtol=1e-5, atol=1e-6), (loss, ref)
    assert jnp.allclose(info["a0_loss"], ref, rtol=1e-5, atol=1e-6)

    # --- Second check: multi-block grid + two core-slices + ragged tail path.
    B2 = 200
    k2p, k2t = jax.random.split(k2)
    pred2 = jax.random.normal(k2p, (B2, H, T), dtype=jnp.float32)
    targ2 = jax.random.normal(k2t, (B2, H, T), dtype=jnp.float32)
    loss2, _ = weighted_state_loss(pred2, targ2, weights,
                                   target_block_bytes=16 * 1024)
    jax.block_until_ready(loss2)
    ref2 = jnp.mean(((pred2 - targ2) ** 2) * weights[None])
    assert jnp.allclose(loss2, ref2, rtol=1e-5, atol=1e-6), (loss2, ref2)

    print("KERNEL_OK")
</pallas_src>

<mosaic_0001>
module attributes {stable_mosaic.version = 11 : i64} {
  func.func @_weighted_state_loss_kernel(%arg0: i32, %arg1: i32, %arg2: memref<2x256xf32, #tpu.memory_space<vmem>>, %arg3: memref<2x256xf32, #tpu.memory_space<vmem>>, %arg4: memref<1x256xf32, #tpu.memory_space<vmem>>, %arg5: memref<1x1xf32, #tpu.memory_space<vmem>>, %arg6: memref<2x256xf32, #tpu.memory_space<vmem>>) attributes {dimension_semantics = [#tpu.dimension_semantics<parallel>, #tpu.dimension_semantics<arbitrary>], iteration_bounds = array<i64: 1, 1>, scalar_prefetch = 0 : i64, scratch_operands = 1 : i64, tpu.core_type = #tpu.core_type<tc>, window_params = [{transform_indices = @transform_0, window_bounds = array<i64: 2, 256>}, {transform_indices = @transform_1, window_bounds = array<i64: 2, 256>}, {pipeline_mode = #tpu.pipeline_mode<synchronous>, transform_indices = @transform_2, window_bounds = array<i64: 1, 256>}, {transform_indices = @transform_3, window_bounds = array<i64: 1, 1>}]} {
    %c0_i32 = arith.constant 0 : i32
    %0 = arith.cmpi eq, %arg1, %c0_i32 : i32
    %1 = arith.extui %0 : i1 to i32
    %c0_i32_0 = arith.constant 0 : i32
    %2 = arith.cmpi ne, %1, %c0_i32_0 : i32
    scf.if %2 {
      %cst = arith.constant 0.000000e+00 : f32
      %16 = vector.broadcast %cst : f32 to vector<2x256xf32>
      %c0_12 = arith.constant 0 : index
      %c0_13 = arith.constant 0 : index
      %17 = vector.load %arg6[%c0_12, %c0_13] : memref<2x256xf32, #tpu.memory_space<vmem>>, vector<2x256xf32>
      tpu.vector_store %arg6[%c0_12, %c0_13], %16 {strides = array<i32>} : memref<2x256xf32, #tpu.memory_space<vmem>>, vector<2x256xf32>,
    } else {
    }
    %c0 = arith.constant 0 : index
    %c0_1 = arith.constant 0 : index
    %3 = vector.load %arg2[%c0, %c0_1] : memref<2x256xf32, #tpu.memory_space<vmem>>, vector<2x256xf32>
    %c0_2 = arith.constant 0 : index
    %c0_3 = arith.constant 0 : index
    %4 = vector.load %arg3[%c0_2, %c0_3] : memref<2x256xf32, #tpu.memory_space<vmem>>, vector<2x256xf32>
    %c0_4 = arith.constant 0 : index
    %c0_5 = arith.constant 0 : index
    %5 = vector.load %arg4[%c0_4, %c0_5] : memref<1x256xf32, #tpu.memory_space<vmem>>, vector<1x256xf32>
    %6 = arith.subf %3, %4 : vector<2x256xf32>
    %7 = arith.mulf %6, %6 : vector<2x256xf32>
    %8 = vector.broadcast %5 : vector<1x256xf32> to vector<2x256xf32>
    %9 = arith.mulf %7, %8 : vector<2x256xf32>
    %c0_6 = arith.constant 0 : index
    %c0_7 = arith.constant 0 : index
    %10 = vector.load %arg6[%c0_6, %c0_7] : memref<2x256xf32, #tpu.memory_space<vmem>>, vector<2x256xf32>
    %11 = arith.addf %10, %9 : vector<2x256xf32>
    %c0_8 = arith.constant 0 : index
    %c0_9 = arith.constant 0 : index
    %12 = vector.load %arg6[%c0_8, %c0_9] : memref<2x256xf32, #tpu.memory_space<vmem>>, vector<2x256xf32>
    tpu.vector_store %arg6[%c0_8, %c0_9], %11 {strides = array<i32>} : memref<2x256xf32, #tpu.memory_space<vmem>>, vector<2x256xf32>,
    %c0_i32_10 = arith.constant 0 : i32
    %13 = arith.cmpi eq, %arg1, %c0_i32_10 : i32
    %14 = arith.extui %13 : i1 to i32
    %c0_i32_11 = arith.constant 0 : i32
    %15 = arith.cmpi ne, %14, %c0_i32_11 : i32
    scf.if %15 {
      %c0_12 = arith.constant 0 : index
      %c0_13 = arith.constant 0 : index
      %16 = vector.load %arg6[%c0_12, %c0_13] : memref<2x256xf32, #tpu.memory_space<vmem>>, vector<2x256xf32>
      %cst = arith.constant dense<0.000000e+00> : vector<256xf32>
      %17 = vector.multi_reduction <add>, %16, %cst [0] : vector<2x256xf32> to vector<256xf32>
      %18 = vector.shape_cast %17 : vector<256xf32> to vector<1x256xf32>
      %cst_14 = arith.constant dense<0.000000e+00> : vector<1xf32>
      %19 = vector.multi_reduction <add>, %18, %cst_14 [1] : vector<1x256xf32> to vector<1xf32>
      %20 = vector.shape_cast %19 : vector<1xf32> to vector<1x1xf32>
      %cst_15 = arith.constant 0.001953125 : f32
      %21 = vector.broadcast %cst_15 : f32 to vector<1x1xf32>
      %22 = arith.mulf %20, %21 : vector<1x1xf32>
      %c0_16 = arith.constant 0 : index
      %c0_17 = arith.constant 0 : index
      %23 = vector.load %arg5[%c0_16, %c0_17] : memref<1x1xf32, #tpu.memory_space<vmem>>, vector<1x1xf32>
      tpu.vector_store %arg5[%c0_16, %c0_17], %22 {strides = array<i32>} : memref<1x1xf32, #tpu.memory_space<vmem>>, vector<1x1xf32>,
    } else {
    }
    return
  }
  func.func @transform_0(%arg0: i32, %arg1: i32) -> (i32, i32) {
    %c1_i32 = arith.constant 1 : i32
    %0 = arith.muli %arg0, %c1_i32 : i32
    %1 = arith.addi %0, %arg1 : i32
    %c0_i32 = arith.constant 0 : i32
    %c0_i32_0 = arith.constant 0 : i32
    return %1, %c0_i32 : i32, i32
  }
  func.func @transform_1(%arg0: i32, %arg1: i32) -> (i32, i32) {
    %c1_i32 = arith.constant 1 : i32
    %0 = arith.muli %arg0, %c1_i32 : i32
    %1 = arith.addi %0, %arg1 : i32
    %c0_i32 = arith.constant 0 : i32
    %c0_i32_0 = arith.constant 0 : i32
    return %1, %c0_i32 : i32, i32
  }
  func.func @transform_2(%arg0: i32, %arg1: i32) -> (i32, i32) {
    %c0_i32 = arith.constant 0 : i32
    %c0_i32_0 = arith.constant 0 : i32
    %c0_i32_1 = arith.constant 0 : i32
    return %c0_i32, %c0_i32_0 : i32, i32
  }
  func.func @transform_3(%arg0: i32, %arg1: i32) -> (i32, i32) {
    %c0_i32 = arith.constant 0 : i32
    %c0_i32_0 = arith.constant 0 : i32
    return %arg0, %c0_i32 : i32, i32
  }
}

</mosaic_0001>

<llo_original>
// kernel: tpu_custom_call.1
$region0: #{tpu_custom_call.1}
  #allocation0 [shape = 'u32[]', space=smem, size = 0x4, offset = 0x4, fixed_abs, tag = 'smem constant byte address 0x4 - core index']
  #allocation1 [shape = 'u32[144,128]{1,0:T(1,128)}', space=vmem, size = 0x12000, scoped, tag = 'internal scratch']
  #allocation2 [shape = 'f32[2,256]{1,0:T(2,128)}', space=vmem, size = 0x800, scoped, tag = 'scratch operand']
  %s0 = inlined_call_operand.hbm [shape: f32[2,256], index: 0, kind: input, shape index: {}]
  %s1 = inlined_call_operand.hbm [shape: f32[2,256], index: 1, kind: input, shape index: {}]
  %s2 = inlined_call_operand.vmem [shape: f32[1,256], index: 2, kind: input, shape index: {}]
  %s3 = inlined_call_operand.hbm [shape: f32[1,1], index: 3, kind: output, shape index: {}]
  %s4 = sld [smem:[#allocation0]]
  $region38: #{tpu_custom_call.1} parent=0
    _
  %s6 = ssub.s32 1, %s4
  %s7 = scalar_select 0, %s6, %s4
  $region1: #{tpu_custom_call.1} parent=0
    #allocation3 [shape = 'u8[2048]{0}', space=vmem, size = 0x800, scoped, tag = 'input window, operand 0, single buffered']
    #allocation4 [shape = 's32[1]{0}', space=sflag, size = 0x4, scoped, tag = 'scoped memory for tpu_custom_call.1']
    #allocation5 [shape = 's32[1]{0}', space=sflag, size = 0x4, scoped, tag = 'scoped memory for tpu_custom_call.1']
    #allocation6 [shape = 'u8[2048]{0}', space=vmem, size = 0x800, scoped, tag = 'input window, operand 1, single buffered']
    #allocation7 [shape = 's32[1]{0}', space=sflag, size = 0x4, scoped, tag = 'scoped memory for tpu_custom_call.1']
    #allocation8 [shape = 'u8[512]{0}', space=vmem, size = 0x400, scoped, tag = 'output window, operand 0, single buffered']
    %8 = vsyncpa [#allocation4], 0
    %9 = vsyncpa [#allocation7], 0
    %10 = vsyncpa [#allocation5], 0
    // Predicated region
    $region2: #{tpu_custom_call.1} parent=1 // pred_check
      _
    $region3: #{tpu_custom_call.1} parent=1 // pred_check_branch
      %12 = sbr.rel (0) target = $region5
    $region4: #{tpu_custom_call.1} parent=1 // pred_region
      %s13 = sadd.s32 0, 0
      %s15 = ssub.s32 64, 64
      %16 = vsyncadd [#allocation4], %s15
      %s17 = smul.addr %s13, 2
      %s18 = smul.addr %s17, 32
      %s19 = scalar_lea.hbm %s0, %s18
      %s21 = sshll.u32 [#allocation3], 4
      %s22 = int_to_ptr.vmem [resolvable:$true] %s21
      %24 = dma.hbm_to_vmem [thread:$0]  %s19, 64, %s22, [#allocation4]
    $region5: #{tpu_custom_call.1} parent=1 // pred_fallthru
      _
    // Predicated region
    $region6: #{tpu_custom_call.1} parent=1 // pred_check
      _
    $region7: #{tpu_custom_call.1} parent=1 // pred_check_branch
      %26 = sbr.rel (0) target = $region9
    $region8: #{tpu_custom_call.1} parent=1 // pred_region
      %s27 = sadd.s32 0, 0
      %s29 = ssub.s32 64, 64
      %30 = vsyncadd [#allocation7], %s29
      %s31 = smul.addr %s27, 2
      %s32 = smul.addr %s31, 32
      %s33 = scalar_lea.hbm %s1, %s32
      %s35 = sshll.u32 [#allocation6], 4
      %s36 = int_to_ptr.vmem [resolvable:$true] %s35
      %38 = dma.hbm_to_vmem [thread:$0]  %s33, 64, %s36, [#allocation7]
    $region9: #{tpu_custom_call.1} parent=1 // pred_fallthru
      _
    // Predicated region
    $region10: #{tpu_custom_call.1} parent=1 // pred_check
      _
    $region11: #{tpu_custom_call.1} parent=1 // pred_check_branch
      %40 = sbr.rel (0) target = $region13
    $region12: #{tpu_custom_call.1} parent=1 // pred_region
      _
    $region13: #{tpu_custom_call.1} parent=1 // pred_fallthru
      _
    // Predicated region
    $region14: #{tpu_custom_call.1} parent=1 // pred_check
      _
    $region15: #{tpu_custom_call.1} parent=1 // pred_check_branch
      %42 = sbr.rel (0) target = $region17
    $region16: #{tpu_custom_call.1} parent=1 // pred_region
      %43 = dma.done [#allocation4], 64
    $region17: #{tpu_custom_call.1} parent=1 // pred_fallthru
      _
    // Predicated region
    $region18: #{tpu_custom_call.1} parent=1 // pred_check
      _
    $region19: #{tpu_custom_call.1} parent=1 // pred_check_branch
      %45 = sbr.rel (0) target = $region21
    $region20: #{tpu_custom_call.1} parent=1 // pred_region
      %46 = dma.done [#allocation7], 64
    $region21: #{tpu_custom_call.1} parent=1 // pred_fallthru
      _
    %s47 = sadd.s32 0, 0
    %s48 = sadd.s32 0, 0
    %p49 = scmp.eq.s32.totalorder 0, 0
    // Predicated region
    $region22: #{tpu_custom_call.1} parent=1 // pred_check
      %p50 = pneg %p49
    $region23: #{tpu_custom_call.1} parent=1 // pred_check_branch
      %52 = sbr.rel (%p50) target = $region25
    $region24: #{tpu_custom_call.1} parent=1 // pred_region
      %53 = vst [vmem:[#allocation2] sm:$0xf] 0.0
    $region25: #{tpu_custom_call.1} parent=1 // pred_fallthru
      _
    %v54 = vld [vmem:[#allocation3] sm:$0xf]
    %v55 = vld [vmem:[#allocation6] sm:$0xf]
    %v56 = vld [vmem:[%s2] sm:$0x3]
    %v57 = vsub.f32 %v54, %v55
    %v58 = vmul.f32 %v57, %v57
    %v60 = vlaneseq
    %v61 = vshrl.u32 %v60, 7
    %v62 = vsub.s32 0, %v61
    %v63 = vrot.slane %v56, %v62
    %v64 = vlaneseq
    %v65 = vshrl.u32 %v64, 7
    %v66 = vsub.s32 1, %v65
    %v67 = vrot.slane %v56, %v66
    %v68 = vcombine.low %v63, %v67
    %v70 = vunpack.c.l.s4 1983009808
    %v71 = vunpack.c.0.s8 %v70
    %v72 = vlaneseq
    %v73 = vshrl.u32 %v72, 7
    %v74 = vsub.s32 %v71, %v73
    %v75 = vrot.slane %v68, %v74
    %v77 = vmul.f32 %v58, %v75
    %v78 = vld [vmem:[#allocation2] sm:$0xf]
    %v79 = vadd.f32 %v78, %v77
    %80 = vst [vmem:[#allocation2] sm:$0xf] %v79
    // Predicated region
    $region26: #{tpu_custom_call.1} parent=1 // pred_check
      %p81 = pneg %p49
    $region27: #{tpu_custom_call.1} parent=1 // pred_check_branch
      %83 = sbr.rel (%p81) target = $region29
    $region28: #{tpu_custom_call.1} parent=1 // pred_region
      %v84 = vld [vmem:[#allocation2] sm:$0xf]
      %v87 = vunpack.c.l.s4 1983009808
      %v88 = vunpack.c.0.s8 %v87
      %v89 = vlaneseq
      %v90 = vshrl.u32 %v89, 7
      %v91 = vsub.s32 %v88, %v90
      %v92 = vrot.slane %v84, %v91
      %v93 = vcombine.high %v92, %v92
      %vm96 = vcmask 1041408
      %v97 = vsel %vm96, %v92, 0.0
      %v98 = vrot.slane %v97, 4
      %v99 = vadd.f32 %v97, %v98
      %v100 = vrot.slane %v99, 2
      %v101 = vadd.f32 %v99, %v100
      %v102 = vrot.slane %v101, 1
      %v103 = vadd.f32 %v101, %v102
      %v104 = vsel %vm96, %v93, 0.0
      %v105 = vrot.slane %v104, 4
      %v106 = vadd.f32 %v104, %v105
      %v107 = vrot.slane %v106, 2
      %v108 = vadd.f32 %v106, %v107
      %v109 = vrot.slane %v108, 1
      %v110 = vadd.f32 %v108, %v109
      %v111 = vadd.f32 %v103, %v110
      %112 = vadd.xlane.f32.xlu0 %v111
      %v113 = vpop.xlane.xlu0 %112
      %v114 = vmul.f32 %v113, 0.001953125
      %vm115 = vcmask 0
      %116 = vst.msk [vmem:[#allocation8] sm:$0x1] %vm115, %v114
    $region29: #{tpu_custom_call.1} parent=1 // pred_fallthru
      _
    // Predicated region
    $region30: #{tpu_custom_call.1} parent=1 // pred_check
      _
    $region31: #{tpu_custom_call.1} parent=1 // pred_check_branch
      %118 = sbr.rel (0) target = $region33
    $region32: #{tpu_custom_call.1} parent=1 // pred_region
      %s120 = ssub.s32 16, 16
      %121 = vsyncadd [#allocation5], %s120
      %s123 = sshll.u32 [#allocation8], 4
      %s124 = int_to_ptr.vmem [resolvable:$true] %s123
      %126 = dma.vmem_to_hbm [thread:$0]  %s124, 16, %s3, [#allocation5]
    $region33: #{tpu_custom_call.1} parent=1 // pred_fallthru
      _
    // Predicated region
    $region34: #{tpu_custom_call.1} parent=1 // pred_check
      _
    $region35: #{tpu_custom_call.1} parent=1 // pred_check_branch
      %128 = sbr.rel (0) target = $region37
    $region36: #{tpu_custom_call.1} parent=1 // pred_region
      %129 = dma.done [#allocation5], 16
    $region37: #{tpu_custom_call.1} parent=1 // pred_fallthru
      _
    %130 = vsyncpa [#allocation4], 1
    %131 = vsyncpa [#allocation7], 1
    %132 = vsyncpa [#allocation5], 1

</llo_original>
